<compile_context>
chip_gen: v7x
topology: tpu7x:2x2x1
jax: 0.10.0
libtpu: 0.0.40
codegen_flags: <defaults>
</compile_context>

<pallas_src>
import functools

import jax
import jax.numpy as jnp
from jax.experimental import pallas as pl
from jax.experimental.pallas import tpu as pltpu


def _kld_kernel(m1_ref, m2_ref, out_ref, *, seq_len, feat):
    x1 = m1_ref[...].astype(jnp.float32)   # (B, L, d)
    x2 = m2_ref[...].astype(jnp.float32)   # (B, L, d)

    # Fused single pass over each slab: sum and sum-of-squares along the feature
    # axis give both the per-row mean ("sigma" in the torch code) and the unbiased
    # variance ("mu") without a second elementwise sweep of the large tiles.
    s1 = jnp.sum(x1, axis=-1)               # (B, L)
    ss1 = jnp.sum(x1 * x1, axis=-1)         # (B, L)
    s2 = jnp.sum(x2, axis=-1)               # (B, L)
    ss2 = jnp.sum(x2 * x2, axis=-1)         # (B, L)

    inv_d = 1.0 / feat
    inv_dm1 = 1.0 / (feat - 1)
    mean1 = s1 * inv_d                      # (B, L)
    mean2 = s2 * inv_d                      # (B, L)
    var1 = (ss1 - s1 * mean1) * inv_dm1     # = sum((x-mean)^2) / (d-1)
    var2 = (ss2 - s2 * mean2) * inv_dm1

    inv_mean2 = 1.0 / mean2                 # shared by term_2 and term_3

    # term_1 = log( det(diag(mean2)) / det(diag(mean1)) )
    #        = sum(log|mean2|) - sum(log|mean1|), NaN if the det ratio is negative
    #          (matches torch's log of a negative ratio).
    log_ratio = jnp.sum(jnp.log(jnp.abs(mean2)) - jnp.log(jnp.abs(mean1)),
                        axis=-1, keepdims=True)                              # (B, 1)
    neg_count = jnp.sum((mean1 < 0).astype(jnp.float32)
                        + (mean2 < 0).astype(jnp.float32),
                        axis=-1, keepdims=True)                              # (B, 1)
    ratio_is_neg = (neg_count - 2.0 * jnp.floor(neg_count * 0.5)) > 0.5
    term1 = jnp.where(ratio_is_neg, jnp.nan, log_ratio)

    # term_2 = trace( diag(mean2)^-1 @ diag(mean1) )
    term2 = jnp.sum(mean1 * inv_mean2, axis=-1, keepdims=True)               # (B, 1)

    # term_3 = (var2 - var1)^T diag(mean2)^-1 (var2 - var1)
    diff = var2 - var1
    term3 = jnp.sum(diff * diff * inv_mean2, axis=-1, keepdims=True)         # (B, 1)

    kl = 0.5 * (term1 - float(seq_len) + term2 + term3)                      # (B, 1)
    out_ref[...] = kl.astype(out_ref.dtype)


def mult_variate_kld(m1, m2, reduction="mean", target_block_bytes=2 * 1024 * 1024):
    assert m1.ndim == 3 and m2.ndim == 3, (
        "Features should have shape (bs, len, d) not " + str(m1.shape))
    assert m1.shape == m2.shape, (m1.shape, m2.shape)
    bs, seq_len, feat = m1.shape
    if reduction not in ("mean", "sum"):
        raise NotImplementedError(f"Reduction type not implemented: {reduction}")

    # Batch elements per grid step: aim for ~2 MiB of input per operand per block
    # (2 operands x 2 pipeline buffers ~ 8 MiB VMEM -> safe on v5e/v6e/v7x defaults).
    per_elem_bytes = seq_len * feat * jnp.dtype(m1.dtype).itemsize
    block_b = int(max(1, min(bs, target_block_bytes // max(per_elem_bytes, 1))))
    num_blocks = pl.cdiv(bs, block_b)

    kernel = functools.partial(_kld_kernel, seq_len=seq_len, feat=feat)
    out = pl.pallas_call(
        kernel,
        out_shape=jax.ShapeDtypeStruct((num_blocks, block_b, 1), jnp.float32),
        grid=(num_blocks,),
        in_specs=[
            pl.BlockSpec((block_b, seq_len, feat), lambda g: (g, 0, 0)),
            pl.BlockSpec((block_b, seq_len, feat), lambda g: (g, 0, 0)),
        ],
        # Each grid step owns its own output block -> no cross-step dependency,
        # so the batch-block axis can be sharded across TensorCores.
        out_specs=pl.BlockSpec((None, block_b, 1), lambda g: (g, 0, 0)),
        compiler_params=pltpu.CompilerParams(
            dimension_semantics=("parallel",),
            vmem_limit_bytes=32 * 1024 * 1024,
        ),
    )(m1, m2)

    # Final reduction in f32 in the wrapper.  Flat layout is g*block_b + i, so the
    # first `bs` entries are exactly the valid batch elements (padding is only in
    # the tail of the last block).
    kl = out.reshape(-1)[:bs]
    return jnp.mean(kl) if reduction == "mean" else jnp.sum(kl)


def _reference(m1, m2, reduction):
    """Plain-JAX float32 reference mirroring the torch math."""
    mean1 = jnp.mean(m1, axis=-1)
    mean2 = jnp.mean(m2, axis=-1)
    var1 = jnp.var(m1, axis=-1, ddof=1)
    var2 = jnp.var(m2, axis=-1, ddof=1)
    term1 = jnp.log(jnp.prod(mean2, axis=-1) / jnp.prod(mean1, axis=-1))
    term2 = jnp.sum(mean1 / mean2, axis=-1)
    term3 = jnp.sum((var2 - var1) ** 2 / mean2, axis=-1)
    kl = 0.5 * (term1 - m1.shape[1] + term2 + term3)
    return jnp.mean(kl) if reduction == "mean" else jnp.sum(kl)


if __name__ == "__main__":
    key = jax.random.PRNGKey(0)
    k1, k2, k3, k4 = jax.random.split(key, 4)

    # Positive offset keeps per-row means positive so the log-determinant is
    # finite, exactly as the torch module implicitly requires of its inputs.
    bs, seq_len, feat = 2, 8, 32
    m1 = jax.random.normal(k1, (bs, seq_len, feat), jnp.float32) + 2.0
    m2 = jax.random.normal(k2, (bs, seq_len, feat), jnp.float32) + 2.0
    for reduction in ("mean", "sum"):
        out = jax.block_until_ready(mult_variate_kld(m1, m2, reduction=reduction))
        ref = _reference(m1, m2, reduction)
        assert jnp.allclose(out, ref, rtol=1e-3, atol=1e-3), (reduction, out, ref)

    # Exercise the multi-block path with a ragged last block (bs not divisible by
    # the per-step batch block) by forcing a small target block size.
    bs2 = 5
    m1b = jax.random.normal(k3, (bs2, seq_len, feat), jnp.float32) + 2.0
    m2b = jax.random.normal(k4, (bs2, seq_len, feat), jnp.float32) + 2.0
    for reduction in ("mean", "sum"):
        out = jax.block_until_ready(
            mult_variate_kld(m1b, m2b, reduction=reduction, target_block_bytes=2048))
        ref = _reference(m1b, m2b, reduction)
        assert jnp.allclose(out, ref, rtol=1e-3, atol=1e-3), (reduction, out, ref)

    print("KERNEL_OK")
</pallas_src>

<mosaic_0001>
module attributes {stable_mosaic.version = 11 : i64} {
  func.func @_kld_kernel(%arg0: i32, %arg1: memref<2x8x32xf32, #tpu.memory_space<vmem>>, %arg2: memref<2x8x32xf32, #tpu.memory_space<vmem>>, %arg3: memref<1x2x1xf32, #tpu.memory_space<vmem>>) attributes {dimension_semantics = [#tpu.dimension_semantics<parallel>], iteration_bounds = array<i64: 1>, scalar_prefetch = 0 : i64, scratch_operands = 0 : i64, tpu.core_type = #tpu.core_type<tc>, window_params = [{transform_indices = @transform_0, window_bounds = array<i64: 2, 8, 32>}, {transform_indices = @transform_1, window_bounds = array<i64: 2, 8, 32>}, {transform_indices = @transform_2, window_bounds = array<i64: 1, 2, 1>}]} {
    %c0 = arith.constant 0 : index
    %c0_0 = arith.constant 0 : index
    %c0_1 = arith.constant 0 : index
    %0 = vector.load %arg1[%c0, %c0_0, %c0_1] : memref<2x8x32xf32, #tpu.memory_space<vmem>>, vector<2x8x32xf32>
    %c0_2 = arith.constant 0 : index
    %c0_3 = arith.constant 0 : index
    %c0_4 = arith.constant 0 : index
    %1 = vector.load %arg2[%c0_2, %c0_3, %c0_4] : memref<2x8x32xf32, #tpu.memory_space<vmem>>, vector<2x8x32xf32>
    %cst = arith.constant dense<0.000000e+00> : vector<2x8xf32>
    %2 = vector.multi_reduction <add>, %0, %cst [2] : vector<2x8x32xf32> to vector<2x8xf32>
    %3 = arith.mulf %0, %0 : vector<2x8x32xf32>
    %cst_5 = arith.constant dense<0.000000e+00> : vector<2x8xf32>
    %4 = vector.multi_reduction <add>, %3, %cst_5 [2] : vector<2x8x32xf32> to vector<2x8xf32>
    %cst_6 = arith.constant dense<0.000000e+00> : vector<2x8xf32>
    %5 = vector.multi_reduction <add>, %1, %cst_6 [2] : vector<2x8x32xf32> to vector<2x8xf32>
    %6 = arith.mulf %1, %1 : vector<2x8x32xf32>
    %cst_7 = arith.constant dense<0.000000e+00> : vector<2x8xf32>
    %7 = vector.multi_reduction <add>, %6, %cst_7 [2] : vector<2x8x32xf32> to vector<2x8xf32>
    %cst_8 = arith.constant 3.125000e-02 : f32
    %8 = vector.broadcast %cst_8 : f32 to vector<2x8xf32>
    %9 = arith.mulf %2, %8 : vector<2x8xf32>
    %cst_9 = arith.constant 3.125000e-02 : f32
    %10 = vector.broadcast %cst_9 : f32 to vector<2x8xf32>
    %11 = arith.mulf %5, %10 : vector<2x8xf32>
    %12 = arith.mulf %2, %9 : vector<2x8xf32>
    %13 = arith.subf %4, %12 : vector<2x8xf32>
    %cst_10 = arith.constant 0.0322580636 : f32
    %14 = vector.broadcast %cst_10 : f32 to vector<2x8xf32>
    %15 = arith.mulf %13, %14 : vector<2x8xf32>
    %16 = arith.mulf %5, %11 : vector<2x8xf32>
    %17 = arith.subf %7, %16 : vector<2x8xf32>
    %cst_11 = arith.constant 0.0322580636 : f32
    %18 = vector.broadcast %cst_11 : f32 to vector<2x8xf32>
    %19 = arith.mulf %17, %18 : vector<2x8xf32>
    %cst_12 = arith.constant 1.000000e+00 : f32
    %20 = vector.broadcast %cst_12 : f32 to vector<2x8xf32>
    %21 = arith.divf %20, %11 : vector<2x8xf32>
    %22 = math.absf %11 : vector<2x8xf32>
    %23 = math.log %22 : vector<2x8xf32>
    %24 = math.absf %9 : vector<2x8xf32>
    %25 = math.log %24 : vector<2x8xf32>
    %26 = arith.subf %23, %25 : vector<2x8xf32>
    %cst_13 = arith.constant dense<0.000000e+00> : vector<2xf32>
    %27 = vector.multi_reduction <add>, %26, %cst_13 [1] : vector<2x8xf32> to vector<2xf32>
    %28 = vector.shape_cast %27 : vector<2xf32> to vector<2x1xf32>
    %cst_14 = arith.constant 0.000000e+00 : f32
    %29 = vector.broadcast %cst_14 : f32 to vector<2x8xf32>
    %30 = arith.cmpf olt, %9, %29 : vector<2x8xf32>
    %31 = arith.extui %30 : vector<2x8xi1> to vector<2x8xi32>
    %32 = arith.sitofp %31 : vector<2x8xi32> to vector<2x8xf32>
    %cst_15 = arith.constant 0.000000e+00 : f32
    %33 = vector.broadcast %cst_15 : f32 to vector<2x8xf32>
    %34 = arith.cmpf olt, %11, %33 : vector<2x8xf32>
    %35 = arith.extui %34 : vector<2x8xi1> to vector<2x8xi32>
    %36 = arith.sitofp %35 : vector<2x8xi32> to vector<2x8xf32>
    %37 = arith.addf %32, %36 : vector<2x8xf32>
    %cst_16 = arith.constant dense<0.000000e+00> : vector<2xf32>
    %38 = vector.multi_reduction <add>, %37, %cst_16 [1] : vector<2x8xf32> to vector<2xf32>
    %39 = vector.shape_cast %38 : vector<2xf32> to vector<2x1xf32>
    %cst_17 = arith.constant 5.000000e-01 : f32
    %40 = vector.broadcast %cst_17 : f32 to vector<2x1xf32>
    %41 = arith.mulf %39, %40 : vector<2x1xf32>
    %42 = math.floor %41 : vector<2x1xf32>
    %cst_18 = arith.constant 2.000000e+00 : f32
    %43 = vector.broadcast %cst_18 : f32 to vector<2x1xf32>
    %44 = arith.mulf %43, %42 : vector<2x1xf32>
    %45 = arith.subf %39, %44 : vector<2x1xf32>
    %cst_19 = arith.constant 5.000000e-01 : f32
    %46 = vector.broadcast %cst_19 : f32 to vector<2x1xf32>
    %47 = arith.cmpf ogt, %45, %46 : vector<2x1xf32>
    %cst_20 = arith.constant 0x7FC00000 : f32
    %48 = vector.broadcast %cst_20 : f32 to vector<2x1xf32>
    %49 = arith.select %47, %48, %28 : vector<2x1xi1>, vector<2x1xf32>
    %50 = arith.mulf %9, %21 : vector<2x8xf32>
    %cst_21 = arith.constant dense<0.000000e+00> : vector<2xf32>
    %51 = vector.multi_reduction <add>, %50, %cst_21 [1] : vector<2x8xf32> to vector<2xf32>
    %52 = vector.shape_cast %51 : vector<2xf32> to vector<2x1xf32>
    %53 = arith.subf %19, %15 : vector<2x8xf32>
    %54 = arith.mulf %53, %53 : vector<2x8xf32>
    %55 = arith.mulf %54, %21 : vector<2x8xf32>
    %cst_22 = arith.constant dense<0.000000e+00> : vector<2xf32>
    %56 = vector.multi_reduction <add>, %55, %cst_22 [1] : vector<2x8xf32> to vector<2xf32>
    %57 = vector.shape_cast %56 : vector<2xf32> to vector<2x1xf32>
    %cst_23 = arith.constant 8.000000e+00 : f32
    %58 = vector.broadcast %cst_23 : f32 to vector<2x1xf32>
    %59 = arith.subf %49, %58 : vector<2x1xf32>
    %60 = arith.addf %59, %52 : vector<2x1xf32>
    %61 = arith.addf %60, %57 : vector<2x1xf32>
    %cst_24 = arith.constant 5.000000e-01 : f32
    %62 = vector.broadcast %cst_24 : f32 to vector<2x1xf32>
    %63 = arith.mulf %62, %61 : vector<2x1xf32>
    %c0_25 = arith.constant 0 : index
    %c0_26 = arith.constant 0 : index
    %c0_27 = arith.constant 0 : index
    %64 = vector.load %arg3[%c0_25, %c0_26, %c0_27] : memref<1x2x1xf32, #tpu.memory_space<vmem>>, vector<1x2x1xf32>
    %65 = vector.shape_cast %64 : vector<1x2x1xf32> to vector<2x1xf32>
    %66 = vector.shape_cast %63 : vector<2x1xf32> to vector<1x2x1xf32>
    tpu.vector_store %arg3[%c0_25, %c0_26, %c0_27], %66 {strides = array<i32>} : memref<1x2x1xf32, #tpu.memory_space<vmem>>, vector<1x2x1xf32>,
    return
  }
  func.func @transform_0(%arg0: i32) -> (i32, i32, i32) {
    %c0_i32 = arith.constant 0 : i32
    %c0_i32_0 = arith.constant 0 : i32
    %c0_i32_1 = arith.constant 0 : i32
    return %arg0, %c0_i32, %c0_i32_0 : i32, i32, i32
  }
  func.func @transform_1(%arg0: i32) -> (i32, i32, i32) {
    %c0_i32 = arith.constant 0 : i32
    %c0_i32_0 = arith.constant 0 : i32
    %c0_i32_1 = arith.constant 0 : i32
    return %arg0, %c0_i32, %c0_i32_0 : i32, i32, i32
  }
  func.func @transform_2(%arg0: i32) -> (i32, i32, i32) {
    %c0_i32 = arith.constant 0 : i32
    %c0_i32_0 = arith.constant 0 : i32
    %c0_i32_1 = arith.constant 0 : i32
    return %arg0, %c0_i32, %c0_i32_0 : i32, i32, i32
  }
}

</mosaic_0001>

<llo_original>
// kernel: tpu_custom_call.1
$region0: #{tpu_custom_call.1}
  #allocation0 [shape = 'u32[]', space=smem, size = 0x4, offset = 0x4, fixed_abs, tag = 'smem constant byte address 0x4 - core index']
  #allocation1 [shape = 'u32[144,128]{1,0:T(1,128)}', space=vmem, size = 0x12000, scoped, tag = 'internal scratch']
  %s0 = inlined_call_operand.hbm [shape: f32[2,8,32], index: 0, kind: input, shape index: {}]
  %s1 = inlined_call_operand.hbm [shape: f32[2,8,32], index: 1, kind: input, shape index: {}]
  %s2 = inlined_call_operand.vmem [shape: f32[1,2,1], index: 2, kind: output, shape index: {}]
  %s3 = sld [smem:[#allocation0]]
  $region26: #{tpu_custom_call.1} parent=0
    _
  %s5 = ssub.s32 1, %s3
  %s6 = scalar_select 0, %s5, %s3
  $region1: #{tpu_custom_call.1} parent=0
    #allocation2 [shape = 'u8[8192]{0}', space=vmem, size = 0x2000, scoped, tag = 'input window, operand 0, single buffered']
    #allocation3 [shape = 's32[1]{0}', space=sflag, size = 0x4, scoped, tag = 'scoped memory for tpu_custom_call.1']
    #allocation4 [shape = 'u8[8192]{0}', space=vmem, size = 0x2000, scoped, tag = 'input window, operand 1, single buffered']
    #allocation5 [shape = 's32[1]{0}', space=sflag, size = 0x4, scoped, tag = 'scoped memory for tpu_custom_call.1']
    %7 = vsyncpa [#allocation3], 0
    %8 = vsyncpa [#allocation5], 0
    // Predicated region
    $region2: #{tpu_custom_call.1} parent=1 // pred_check
      _
    $region3: #{tpu_custom_call.1} parent=1 // pred_check_branch
      %10 = sbr.rel (0) target = $region5
    $region4: #{tpu_custom_call.1} parent=1 // pred_region
      %s12 = ssub.s32 256, 256
      %13 = vsyncadd [#allocation3], %s12
      %s14 = sshll.u32 [#allocation2], 4
      %s15 = int_to_ptr.vmem [resolvable:$true] %s14
      %20 = dma.hbm_to_vmem [thread:$0]  %s0, 256, %s15, [#allocation3], 128, 128, 8
    $region5: #{tpu_custom_call.1} parent=1 // pred_fallthru
      _
    // Predicated region
    $region6: #{tpu_custom_call.1} parent=1 // pred_check
      _
    $region7: #{tpu_custom_call.1} parent=1 // pred_check_branch
      %22 = sbr.rel (0) target = $region9
    $region8: #{tpu_custom_call.1} parent=1 // pred_region
      %s24 = ssub.s32 256, 256
      %25 = vsyncadd [#allocation5], %s24
      %s26 = sshll.u32 [#allocation4], 4
      %s27 = int_to_ptr.vmem [resolvable:$true] %s26
      %32 = dma.hbm_to_vmem [thread:$0]  %s1, 256, %s27, [#allocation5], 128, 128, 8
    $region9: #{tpu_custom_call.1} parent=1 // pred_fallthru
      _
    // Predicated region
    $region10: #{tpu_custom_call.1} parent=1 // pred_check
      _
    $region11: #{tpu_custom_call.1} parent=1 // pred_check_branch
      %34 = sbr.rel (0) target = $region13
    $region12: #{tpu_custom_call.1} parent=1 // pred_region
      %35 = dma.done [#allocation3], 256
    $region13: #{tpu_custom_call.1} parent=1 // pred_fallthru
      _
    // Predicated region
    $region14: #{tpu_custom_call.1} parent=1 // pred_check
      _
    $region15: #{tpu_custom_call.1} parent=1 // pred_check_branch
      %37 = sbr.rel (0) target = $region17
    $region16: #{tpu_custom_call.1} parent=1 // pred_region
      %38 = dma.done [#allocation5], 256
    $region17: #{tpu_custom_call.1} parent=1 // pred_fallthru
      _
    %v39 = vld [vmem:[#allocation2] sm:$0xff]
    %v40 = vld [vmem:[#allocation2 + $0x8] sm:$0xff]
    %v41 = vld [vmem:[#allocation4] sm:$0xff]
    %v42 = vld [vmem:[#allocation4 + $0x8] sm:$0xff]
    %vm43 = vcmask 261120
    %v44 = vsel %vm43, %v39, 0.0
    %45 = vadd.xlane.f32.xlu0 %v44
    %v46 = vpop.xlane.xlu0 %45
    %v47 = vsel %vm43, %v40, 0.0
    %48 = vadd.xlane.f32.xlu0 %v47
    %v49 = vpop.xlane.xlu0 %48
    %v50 = vmul.f32 %v39, %v39
    %v51 = vmul.f32 %v40, %v40
    %v52 = vsel %vm43, %v50, 0.0
    %53 = vadd.xlane.f32.xlu0 %v52
    %v54 = vpop.xlane.xlu0 %53
    %v55 = vsel %vm43, %v51, 0.0
    %56 = vadd.xlane.f32.xlu0 %v55
    %v57 = vpop.xlane.xlu0 %56
    %v58 = vsel %vm43, %v41, 0.0
    %59 = vadd.xlane.f32.xlu0 %v58
    %v60 = vpop.xlane.xlu0 %59
    %v61 = vsel %vm43, %v42, 0.0
    %62 = vadd.xlane.f32.xlu0 %v61
    %v63 = vpop.xlane.xlu0 %62
    %v64 = vmul.f32 %v41, %v41
    %v65 = vmul.f32 %v42, %v42
    %v66 = vsel %vm43, %v64, 0.0
    %67 = vadd.xlane.f32.xlu0 %v66
    %v68 = vpop.xlane.xlu0 %67
    %v69 = vsel %vm43, %v65, 0.0
    %70 = vadd.xlane.f32.xlu0 %v69
    %v71 = vpop.xlane.xlu0 %70
    %v72 = vmul.f32 %v46, 0.03125
    %v73 = vmul.f32 %v49, 0.03125
    %v74 = vmul.f32 %v60, 0.03125
    %v75 = vmul.f32 %v63, 0.03125
    %v76 = vmul.f32 %v46, %v72
    %v77 = vmul.f32 %v49, %v73
    %v78 = vsub.f32 %v54, %v76
    %v79 = vsub.f32 %v57, %v77
    %v80 = vmul.f32 %v78, 0.032258064
    %v81 = vmul.f32 %v79, 0.032258064
    %v82 = vmul.f32 %v60, %v74
    %v83 = vmul.f32 %v63, %v75
    %v84 = vsub.f32 %v68, %v82
    %v85 = vsub.f32 %v71, %v83
    %v86 = vmul.f32 %v84, 0.032258064
    %v87 = vmul.f32 %v85, 0.032258064
    %v88 = vrcp.pop %v74
    %v89 = vmul.f32 1.0, %v88
    %v90 = vrcp.pop %v75
    %v91 = vmul.f32 1.0, %v90
    %v92 = vand.u32 2147483647, %v74
    %v93 = vand.u32 2147483647, %v75
    %v94 = vlog2.pop %v92
    %v95 = vmul.f32 %v94, 0.6931472
    %v96 = vlog2.pop %v93
    %v97 = vmul.f32 %v96, 0.6931472
    %v98 = vand.u32 2147483647, %v72
    %v99 = vand.u32 2147483647, %v73
    %v100 = vlog2.pop %v98
    %v101 = vmul.f32 %v100, 0.6931472
    %v102 = vlog2.pop %v99
    %v103 = vmul.f32 %v102, 0.6931472
    %v104 = vsub.f32 %v95, %v101
    %v105 = vsub.f32 %v97, %v103
    %v108 = vlaneseq
    %v109 = vand.u32 %v108, 127
    %v110 = vlaneseq
    %v111 = vshrl.u32 %v110, 7
    %v112 = vsub.s32 %v109, %v111
    %v113 = vrot.slane %v104, %v112
    %v114 = vlaneseq
    %v115 = vshrl.u32 %v114, 7
    %v116 = vsub.s32 %v109, %v115
    %v117 = vrot.slane %v105, %v116
    %vm118 = vcmask 1041409
    %v119 = vsel %vm118, %v117, %v113
    %vm121 = vcmask 58368
    %v122 = vsel %vm121, %v119, 0.0
    %123 = vadd.xlane.f32.xlu0 %v122
    %v124 = vpop.xlane.xlu0 %123
    %vm125 = vcmp.lt.f32.partialorder %v72, 0.0
    %vm126 = vcmp.lt.f32.partialorder %v73, 0.0
    %v127 = vsel %vm125, 1, 0
    %v128 = vsel %vm126, 1, 0
    %v129 = vcvt.s32.f32 %v127
    %v130 = vcvt.s32.f32 %v128
    %vm131 = vcmp.lt.f32.partialorder %v74, 0.0
    %vm132 = vcmp.lt.f32.partialorder %v75, 0.0
    %v133 = vsel %vm131, 1, 0
    %v134 = vsel %vm132, 1, 0
    %v135 = vcvt.s32.f32 %v133
    %v136 = vcvt.s32.f32 %v134
    %v137 = vadd.f32 %v129, %v135
    %v138 = vadd.f32 %v130, %v136
    %v141 = vlaneseq
    %v142 = vshrl.u32 %v141, 7
    %v143 = vsub.s32 %v109, %v142
    %v144 = vrot.slane %v137, %v143
    %v145 = vlaneseq
    %v146 = vshrl.u32 %v145, 7
    %v147 = vsub.s32 %v109, %v146
    %v148 = vrot.slane %v138, %v147
    %v149 = vsel %vm118, %v148, %v144
    %v151 = vsel %vm121, %v149, 0.0
    %152 = vadd.xlane.f32.xlu0 %v151
    %v153 = vpop.xlane.xlu0 %152
    %v154 = vmul.f32 %v153, 0.5
    %v155 = vfloor.f32 %v154
    %v156 = vmul.f32 %v155, 2.0
    %v157 = vsub.f32 %v153, %v156
    %vm158 = vcmp.gt.f32.partialorder %v157, 0.5
    %v159 = vsel %vm158, nan, %v124
    %v160 = vmul.f32 %v72, %v89
    %v161 = vmul.f32 %v73, %v91
    %v164 = vlaneseq
    %v165 = vshrl.u32 %v164, 7
    %v166 = vsub.s32 %v109, %v165
    %v167 = vrot.slane %v160, %v166
    %v168 = vlaneseq
    %v169 = vshrl.u32 %v168, 7
    %v170 = vsub.s32 %v109, %v169
    %v171 = vrot.slane %v161, %v170
    %v172 = vsel %vm118, %v171, %v167
    %v174 = vsel %vm121, %v172, 0.0
    %175 = vadd.xlane.f32.xlu0 %v174
    %v176 = vpop.xlane.xlu0 %175
    %v177 = vsub.f32 %v86, %v80
    %v178 = vsub.f32 %v87, %v81
    %v179 = vmul.f32 %v177, %v177
    %v180 = vmul.f32 %v178, %v178
    %v181 = vmul.f32 %v179, %v89
    %v182 = vmul.f32 %v180, %v91
    %v185 = vlaneseq
    %v186 = vshrl.u32 %v185, 7
    %v187 = vsub.s32 %v109, %v186
    %v188 = vrot.slane %v181, %v187
    %v189 = vlaneseq
    %v190 = vshrl.u32 %v189, 7
    %v191 = vsub.s32 %v109, %v190
    %v192 = vrot.slane %v182, %v191
    %v193 = vsel %vm118, %v192, %v188
    %v195 = vsel %vm121, %v193, 0.0
    %196 = vadd.xlane.f32.xlu0 %v195
    %v197 = vpop.xlane.xlu0 %196
    %v198 = vsub.f32 %v159, 8.0
    %v199 = vadd.f32 %v198, %v176
    %v200 = vadd.f32 %v199, %v197
    %v201 = vmul.f32 %v200, 0.5
    %vm202 = vcmask 1024
    %203 = vst.msk [vmem:[%s2] sm:$0x3] %vm202, %v201
    // Predicated region
    $region18: #{tpu_custom_call.1} parent=1 // pred_check
      _
    $region19: #{tpu_custom_call.1} parent=1 // pred_check_branch
      %205 = sbr.rel (0) target = $region21
    $region20: #{tpu_custom_call.1} parent=1 // pred_region
      _
    $region21: #{tpu_custom_call.1} parent=1 // pred_fallthru
      _
    // Predicated region
    $region22: #{tpu_custom_call.1} parent=1 // pred_check
      _
    $region23: #{tpu_custom_call.1} parent=1 // pred_check_branch
      %207 = sbr.rel (0) target = $region25
    $region24: #{tpu_custom_call.1} parent=1 // pred_region
      _
    $region25: #{tpu_custom_call.1} parent=1 // pred_fallthru
      _
    %208 = vsyncpa [#allocation3], 1
    %209 = vsyncpa [#allocation5], 1

</llo_original>
